<compile_context>
chip_gen: v5e
topology: v5e:2x2
jax: 0.10.0
libtpu: 0.0.40
codegen_flags: <defaults>
</compile_context>

<pallas_src>
import jax
import jax.numpy as jnp
import numpy as np
from jax import lax
from jax.experimental import pallas as pl
from jax.experimental.pallas import tpu as pltpu

LANES = 128
TARGET_BLOCK_ROWS = 2048


def _cdiv(a, b):
    return -(-a // b)


def _round_up(a, m):
    return _cdiv(a, m) * m


def _chip_config():
    """Returns (num_splits, core_parallel_sem, vmem_budget_bytes, vmem_cap_bytes)."""
    try:
        kind = jax.devices()[0].device_kind.lower()
    except Exception:
        kind = ""
    if ("v7" in kind) or ("7x" in kind):
        # v7x: 2 TensorCores/chip, 64 MiB physical VMEM per TC.
        core_parallel = getattr(pltpu, "CORE_PARALLEL", None)
        num_splits = 2 if core_parallel is not None else 1
        return num_splits, core_parallel, 24 << 20, 40 << 20
    # v5e / v6e: single TensorCore, 128 MiB physical VMEM -> no split axis.
    return 1, None, 64 << 20, 96 << 20


def _make_kernel(groups, n_streams, block_rows, blocks_per_split, num_splits):
    """groups: tuple of (full_blocks, n_valid_or_None, always_full, entries);
    entries: tuple of (a_idx, b_idx, kind, scale)."""

    def kernel(*refs):
        in_refs = refs[:n_streams]
        out_ref = refs[n_streams]
        acc_ref = refs[n_streams + 1]

        if num_splits > 1:
            p = pl.program_id(0)
            j = pl.program_id(1)
            last_j = pl.num_programs(1) - 1
            g = p * blocks_per_split + j
        else:
            j = pl.program_id(0)
            last_j = pl.num_programs(0) - 1
            g = j

        @pl.when(j == 0)
        def _():
            acc_ref[...] = jnp.zeros_like(acc_ref)

        def emit(entries, n_valid):
            # Loads / pair-differences deduplicated within this region only
            # (values must not cross pl.when region boundaries).
            loads = {}

            def load(i):
                if i not in loads:
                    loads[i] = in_refs[i][...].astype(jnp.float32)
                return loads[i]

            diffs = {}

            def diff(a, b):
                if (a, b) not in diffs:
                    diffs[(a, b)] = load(a) - load(b)
                return diffs[(a, b)]

            total = None
            for a_idx, b_idx, kind, scale in entries:
                d = diff(a_idx, b_idx)
                if kind == "mse":
                    t = d * d
                elif kind == "l1":
                    t = jnp.abs(d)
                else:
                    raise ValueError(f"unsupported loss kind: {kind}")
                t = t * jnp.float32(scale)
                total = t if total is None else total + t
            if n_valid is not None:
                # Boundary block only: mask the ragged tail with a select.
                row_iota = lax.broadcasted_iota(jnp.int32, (block_rows, LANES), 0)
                lane_iota = lax.broadcasted_iota(jnp.int32, (block_rows, LANES), 1)
                flat_id = (g * block_rows + row_iota) * LANES + lane_iota
                total = jnp.where(flat_id < n_valid, total, 0.0)
            acc_ref[...] = acc_ref[...] + total

        for full_blocks, n_valid, always_full, entries in groups:
            if always_full:
                emit(entries, None)
                continue
            if full_blocks > 0:
                @pl.when(g < full_blocks)
                def _(entries=entries):
                    emit(entries, None)
            if n_valid is not None:
                @pl.when(g == full_blocks)
                def _(entries=entries, n_valid=n_valid):
                    emit(entries, n_valid)

        @pl.when(j == last_j)
        def _():
            out_ref[0, 0] = jnp.sum(acc_ref[...])

    return kernel


def _stream_index_map(blocks_per_split, num_splits, last_block):
    # Clamp once the stream is exhausted: a repeated block index lets Pallas
    # skip the re-DMA; the kernel's pl.when gates skip the compute.
    if num_splits > 1:
        def index_map(p, j):
            return (jnp.minimum(p * blocks_per_split + j, last_block), 0)
    else:
        def index_map(j):
            return (jnp.minimum(j, last_block), 0)
    return index_map


def combined_loss(predicted, features, target, loss_dict):
    """Pallas equivalent of CombinedLoss(loss_dict)(predicted, features, target)."""
    if not loss_dict:
        return jnp.float32(0.0)

    # 'Main' branch slice; reuse target (zero cost) when it already has 2 ch.
    # TODO(synk): when C != 2, the materialized target[:, 0:2] is one extra HBM
    # write+read of ~2 channels ahead of an HBM-bound kernel; acceptable while
    # the Main pair is small relative to total traffic (a channel-aware
    # BlockSpec on the un-sliced target would avoid it).
    target_main = target if target.shape[1] == 2 else target[:, 0:2]

    # Deduplicate input streams so each distinct array is DMA'd once.
    streams, stream_idx = [], {}

    def add_stream(x):
        key = id(x)
        if key not in stream_idx:
            stream_idx[key] = len(streams)
            streams.append(x)
        return stream_idx[key]

    raw_entries = []
    for name, (fn_kind, weight) in loss_dict.items():
        if "features" in name:
            a, b = features, target
        elif "Main" in name:
            a, b = predicted, target_main
        else:
            a, b = predicted, target
        assert a.shape == b.shape, f"shape mismatch in branch {name}"
        n = int(np.prod(a.shape))
        raw_entries.append(
            (add_stream(a), add_stream(b), fn_kind, float(weight) / float(n), n))

    # Flatten each distinct stream to (rows, 128) in its NATIVE dtype.  A
    # contiguous row-major reshape is bitcast-equivalent (no HBM pass).
    stream_rows, flat_streams = [], []
    for x in streams:
        n = int(np.prod(x.shape))
        rows = _cdiv(n, LANES)
        flat = x.reshape(-1)
        if rows * LANES != n:
            # TODO(synk): ragged tail (n % 128 != 0) still costs one extra HBM
            # pass for the pad; rarely hit for conv feature maps.  The padded
            # zeros contribute 0 for mse/l1 and the boundary mask excludes them.
            flat = jnp.pad(flat, (0, rows * LANES - n))
        flat_streams.append(flat.reshape(rows, LANES))
        stream_rows.append(rows)

    max_rows = max(stream_rows)

    num_splits, core_parallel, vmem_budget, vmem_cap = _chip_config()

    # Packed-sublane multiple of the narrowest stream dtype (8 f32 / 16 bf16 / 32 i8).
    mult = max(max(8, 32 // max(1, jnp.dtype(x.dtype).itemsize)) for x in streams)

    # Explicit VMEM budget: 2 pipeline buffers per stream + 1 f32 accumulator.
    bytes_per_row = LANES * (
        2 * sum(jnp.dtype(x.dtype).itemsize for x in streams) + 4)
    budget_rows = max(mult, (vmem_budget // bytes_per_row) // mult * mult)

    block_rows = max(mult, min(TARGET_BLOCK_ROWS, budget_rows,
                               _round_up(max_rows, mult)))
    block_elems = block_rows * LANES

    total_blocks = _cdiv(max_rows, block_rows)
    num_splits = min(num_splits, total_blocks)
    blocks_per_split = _cdiv(total_blocks, num_splits)
    grid_blocks = num_splits * blocks_per_split

    # Group loss entries by valid-element count so pl.when gating and the
    # single boundary-block mask are shared per group.
    by_n = {}
    for a_idx, b_idx, kind, scale, n in raw_entries:
        by_n.setdefault(n, []).append((a_idx, b_idx, kind, scale))
    groups = []
    for n, entries in sorted(by_n.items(), reverse=True):
        full_blocks = n // block_elems
        has_partial = (n % block_elems) != 0
        always_full = (not has_partial) and full_blocks >= grid_blocks
        groups.append((full_blocks, n if has_partial else None,
                       always_full, tuple(entries)))

    kernel = _make_kernel(tuple(groups), len(streams), block_rows,
                          blocks_per_split, num_splits)

    in_specs = [
        pl.BlockSpec(
            (block_rows, LANES),
            _stream_index_map(blocks_per_split, num_splits,
                              _cdiv(r, block_rows) - 1),
        )
        for r in stream_rows
    ]

    if num_splits > 1:
        grid = (num_splits, blocks_per_split)
        out_spec = pl.BlockSpec((1, 1), lambda p, j: (p, 0),
                                memory_space=pltpu.SMEM)
        arbitrary = getattr(pltpu, "ARBITRARY", "arbitrary")
        dim_sems = (core_parallel if core_parallel is not None else "parallel",
                    arbitrary)
    else:
        grid = (blocks_per_split,)
        out_spec = pl.BlockSpec((1, 1), lambda j: (0, 0),
                                memory_space=pltpu.SMEM)
        dim_sems = ("arbitrary",)

    footprint = (2 * sum(block_rows * LANES * jnp.dtype(x.dtype).itemsize
                         for x in streams)
                 + block_rows * LANES * 4)
    vmem_limit = int(min(vmem_cap, max(footprint + (8 << 20), 32 << 20)))

    partials = pl.pallas_call(
        kernel,
        out_shape=jax.ShapeDtypeStruct((num_splits, 1), jnp.float32),
        grid_spec=pltpu.PrefetchScalarGridSpec(
            num_scalar_prefetch=0,
            grid=grid,
            in_specs=in_specs,
            out_specs=out_spec,
            scratch_shapes=[pltpu.VMEM((block_rows, LANES), jnp.float32)],
        ),
        compiler_params=pltpu.CompilerParams(
            dimension_semantics=dim_sems,
            vmem_limit_bytes=vmem_limit),
    )(*flat_streams)

    if num_splits > 1:
        return jnp.sum(partials)
    return partials[0, 0]


if __name__ == "__main__":
    key = jax.random.PRNGKey(0)
    k1, k2, k3, k4, k5, k6 = jax.random.split(key, 6)

    # ---- Test 1: C == 2, all three branch types active (Main slice == target).
    B, C, H, W = 2, 2, 16, 16
    predicted = jax.random.normal(k1, (B, C, H, W), dtype=jnp.float32)
    features = jax.random.normal(k2, (B, C, H, W), dtype=jnp.float32)
    target = jax.random.normal(k3, (B, C, H, W), dtype=jnp.float32)

    loss_dict = {
        "Main_MSE": ("mse", 0.5),    # 'Main'     -> loss(pred, target[:, 0:2])
        "features_L1": ("l1", 0.3),  # 'features' -> loss(features, target)
        "Aux_L1": ("l1", 0.2),       # else       -> loss(pred, target)
    }

    loss1 = jax.block_until_ready(combined_loss(predicted, features, target, loss_dict))
    tm = target[:, 0:2]
    ref1 = (0.5 * jnp.mean((predicted - tm) ** 2)
            + 0.3 * jnp.mean(jnp.abs(features - target))
            + 0.2 * jnp.mean(jnp.abs(predicted - target)))
    assert np.allclose(np.asarray(loss1), np.asarray(ref1), rtol=1e-5, atol=1e-6), (
        float(loss1), float(ref1))

    # ---- Test 2: C == 4, heterogeneous branch sizes (exercises blocks larger
    # than the small 'Main' pair, clamped index_map, pl.when gating and the
    # boundary-block element mask).
    B2, C2, H2, W2 = 2, 4, 16, 32
    predicted2 = jax.random.normal(k4, (B2, 2, H2, W2), dtype=jnp.float32)
    features2 = jax.random.normal(k5, (B2, C2, H2, W2), dtype=jnp.float32)
    target2 = jax.random.normal(k6, (B2, C2, H2, W2), dtype=jnp.float32)

    loss_dict2 = {
        "Main_MSE": ("mse", 0.7),
        "features_L1": ("l1", 0.3),
    }
    loss2 = jax.block_until_ready(
        combined_loss(predicted2, features2, target2, loss_dict2))
    ref2 = (0.7 * jnp.mean((predicted2 - target2[:, 0:2]) ** 2)
            + 0.3 * jnp.mean(jnp.abs(features2 - target2)))
    assert np.allclose(np.asarray(loss2), np.asarray(ref2), rtol=1e-5, atol=1e-6), (
        float(loss2), float(ref2))

    print("KERNEL_OK")
</pallas_src>

<mosaic_0001>
module attributes {stable_mosaic.version = 11 : i64} {
  func.func @kernel(%arg0: i32, %arg1: memref<8x128xf32, #tpu.memory_space<vmem>>, %arg2: memref<8x128xf32, #tpu.memory_space<vmem>>, %arg3: memref<8x128xf32, #tpu.memory_space<vmem>>, %arg4: memref<1x1xf32, #tpu.memory_space<smem>>, %arg5: memref<8x128xf32, #tpu.memory_space<vmem>>) attributes {dimension_semantics = [#tpu.dimension_semantics<arbitrary>], iteration_bounds = array<i64: 1>, scalar_prefetch = 0 : i64, scratch_operands = 1 : i64, tpu.core_type = #tpu.core_type<tc>, window_params = [{transform_indices = @transform_0, window_bounds = array<i64: 8, 128>}, {transform_indices = @transform_1, window_bounds = array<i64: 8, 128>}, {transform_indices = @transform_2, window_bounds = array<i64: 8, 128>}, {transform_indices = @transform_3, window_bounds = array<i64: 1, 1>}]} {
    %c0_i32 = arith.constant 0 : i32
    %0 = arith.cmpi eq, %arg0, %c0_i32 : i32
    %1 = arith.extui %0 : i1 to i32
    %c0_i32_0 = arith.constant 0 : i32
    %2 = arith.cmpi ne, %1, %c0_i32_0 : i32
    scf.if %2 {
      %cst_14 = arith.constant 0.000000e+00 : f32
      %25 = vector.broadcast %cst_14 : f32 to vector<8x128xf32>
      %c0_15 = arith.constant 0 : index
      %c0_16 = arith.constant 0 : index
      %26 = vector.load %arg5[%c0_15, %c0_16] : memref<8x128xf32, #tpu.memory_space<vmem>>, vector<8x128xf32>
      tpu.vector_store %arg5[%c0_15, %c0_16], %25 {strides = array<i32>} : memref<8x128xf32, #tpu.memory_space<vmem>>, vector<8x128xf32>,
    } else {
    }
    %c0 = arith.constant 0 : index
    %c0_1 = arith.constant 0 : index
    %3 = vector.load %arg1[%c0, %c0_1] : memref<8x128xf32, #tpu.memory_space<vmem>>, vector<8x128xf32>
    %c0_2 = arith.constant 0 : index
    %c0_3 = arith.constant 0 : index
    %4 = vector.load %arg2[%c0_2, %c0_3] : memref<8x128xf32, #tpu.memory_space<vmem>>, vector<8x128xf32>
    %5 = arith.subf %3, %4 : vector<8x128xf32>
    %6 = arith.mulf %5, %5 : vector<8x128xf32>
    %cst = arith.constant 4.8828125E-4 : f32
    %7 = vector.broadcast %cst : f32 to vector<8x128xf32>
    %8 = arith.mulf %6, %7 : vector<8x128xf32>
    %c0_4 = arith.constant 0 : index
    %c0_5 = arith.constant 0 : index
    %9 = vector.load %arg3[%c0_4, %c0_5] : memref<8x128xf32, #tpu.memory_space<vmem>>, vector<8x128xf32>
    %10 = arith.subf %9, %4 : vector<8x128xf32>
    %11 = math.absf %10 : vector<8x128xf32>
    %cst_6 = arith.constant 2.92968762E-4 : f32
    %12 = vector.broadcast %cst_6 : f32 to vector<8x128xf32>
    %13 = arith.mulf %11, %12 : vector<8x128xf32>
    %14 = arith.addf %8, %13 : vector<8x128xf32>
    %15 = math.absf %5 : vector<8x128xf32>
    %cst_7 = arith.constant 1.95312503E-4 : f32
    %16 = vector.broadcast %cst_7 : f32 to vector<8x128xf32>
    %17 = arith.mulf %15, %16 : vector<8x128xf32>
    %18 = arith.addf %14, %17 : vector<8x128xf32>
    %c0_8 = arith.constant 0 : index
    %c0_9 = arith.constant 0 : index
    %19 = vector.load %arg5[%c0_8, %c0_9] : memref<8x128xf32, #tpu.memory_space<vmem>>, vector<8x128xf32>
    %20 = arith.addf %19, %18 : vector<8x128xf32>
    %c0_10 = arith.constant 0 : index
    %c0_11 = arith.constant 0 : index
    %21 = vector.load %arg5[%c0_10, %c0_11] : memref<8x128xf32, #tpu.memory_space<vmem>>, vector<8x128xf32>
    tpu.vector_store %arg5[%c0_10, %c0_11], %20 {strides = array<i32>} : memref<8x128xf32, #tpu.memory_space<vmem>>, vector<8x128xf32>,
    %c0_i32_12 = arith.constant 0 : i32
    %22 = arith.cmpi eq, %arg0, %c0_i32_12 : i32
    %23 = arith.extui %22 : i1 to i32
    %c0_i32_13 = arith.constant 0 : i32
    %24 = arith.cmpi ne, %23, %c0_i32_13 : i32
    scf.if %24 {
      %c0_14 = arith.constant 0 : index
      %c0_15 = arith.constant 0 : index
      %25 = vector.load %arg5[%c0_14, %c0_15] : memref<8x128xf32, #tpu.memory_space<vmem>>, vector<8x128xf32>
      %26 = vector.shape_cast %25 : vector<8x128xf32> to vector<1x8x128xf32>
      %cst_16 = arith.constant dense<0.000000e+00> : vector<1xf32>
      %27 = vector.multi_reduction <add>, %26, %cst_16 [1, 2] : vector<1x8x128xf32> to vector<1xf32>
      %28 = vector.shape_cast %27 : vector<1xf32> to vector<1x1x1xf32>
      %29 = vector.extract %28[0, 0, 0] : f32 from vector<1x1x1xf32>
      %c0_17 = arith.constant 0 : index
      %c0_18 = arith.constant 0 : index
      %30 = memref.load %arg4[%c0_17, %c0_18] : memref<1x1xf32, #tpu.memory_space<smem>>
      memref.store %29, %arg4[%c0_17, %c0_18] : memref<1x1xf32, #tpu.memory_space<smem>>
    } else {
    }
    return
  }
  func.func @transform_0(%arg0: i32) -> (i32, i32) {
    %c0_i32 = arith.constant 0 : i32
    %0 = arith.minsi %arg0, %c0_i32 : i32
    %c0_i32_0 = arith.constant 0 : i32
    %c0_i32_1 = arith.constant 0 : i32
    return %0, %c0_i32_0 : i32, i32
  }
  func.func @transform_1(%arg0: i32) -> (i32, i32) {
    %c0_i32 = arith.constant 0 : i32
    %0 = arith.minsi %arg0, %c0_i32 : i32
    %c0_i32_0 = arith.constant 0 : i32
    %c0_i32_1 = arith.constant 0 : i32
    return %0, %c0_i32_0 : i32, i32
  }
  func.func @transform_2(%arg0: i32) -> (i32, i32) {
    %c0_i32 = arith.constant 0 : i32
    %0 = arith.minsi %arg0, %c0_i32 : i32
    %c0_i32_0 = arith.constant 0 : i32
    %c0_i32_1 = arith.constant 0 : i32
    return %0, %c0_i32_0 : i32, i32
  }
  func.func @transform_3(%arg0: i32) -> (i32, i32) {
    %c0_i32 = arith.constant 0 : i32
    %c0_i32_0 = arith.constant 0 : i32
    %c0_i32_1 = arith.constant 0 : i32
    return %c0_i32, %c0_i32_0 : i32, i32
  }
}

</mosaic_0001>

<llo_original>
// kernel: tpu_custom_call.1
$region0: #{tpu_custom_call.1}
  #allocation0 [shape = 'u32[]', space=smem, size = 0x4, offset = 0x4, fixed_abs, tag = 'smem constant byte address 0x4 - core index']
  #allocation1 [shape = 'u32[72,128]{1,0:T(1,128)}', space=vmem, size = 0x9000, scoped, tag = 'internal scratch']
  #allocation2 [shape = 'f32[8,128]{1,0:T(8,128)}', space=vmem, size = 0x1000, scoped, tag = 'scratch operand']
  %s0 = inlined_call_operand.hbm [shape: f32[8,128], index: 0, kind: input, shape index: {}]
  %s1 = inlined_call_operand.hbm [shape: f32[8,128], index: 1, kind: input, shape index: {}]
  %s2 = inlined_call_operand.hbm [shape: f32[8,128], index: 2, kind: input, shape index: {}]
  %s3 = inlined_call_operand.hbm [shape: f32[1,1], index: 3, kind: output, shape index: {}]
  %s4 = sld [smem:[#allocation0]]
  $region42: #{tpu_custom_call.1} parent=0
    _
  %s6 = ssub.s32 1, %s4
  %s7 = scalar_select 0, %s6, %s4
  $region1: #{tpu_custom_call.1} parent=0
    #allocation3 [shape = 'u8[4096]{0}', space=vmem, size = 0x1000, scoped, tag = 'input window, operand 0, single buffered']
    #allocation4 [shape = 's32[1]{0}', space=sflag, size = 0x4, scoped, tag = 'scoped memory for tpu_custom_call.1']
    #allocation5 [shape = 's32[1]{0}', space=sflag, size = 0x4, scoped, tag = 'scoped memory for tpu_custom_call.1']
    #allocation6 [shape = 'u8[4096]{0}', space=vmem, size = 0x1000, scoped, tag = 'input window, operand 1, single buffered']
    #allocation7 [shape = 's32[1]{0}', space=sflag, size = 0x4, scoped, tag = 'scoped memory for tpu_custom_call.1']
    #allocation8 [shape = 'u8[4096]{0}', space=vmem, size = 0x1000, scoped, tag = 'input window, operand 2, single buffered']
    #allocation9 [shape = 'u8[512]{0}', space=smem, size = 0x200, scoped, tag = 'output window, operand 0, single buffered']
    %8 = vsyncpa [#allocation4], 0
    %9 = vsyncpa [#allocation7], 0
    %10 = vsyncpa [#allocation5], 0
    // Predicated region
    $region2: #{tpu_custom_call.1} parent=1 // pred_check
      _
    $region3: #{tpu_custom_call.1} parent=1 // pred_check_branch
      %12 = sbr.rel (0) target = $region5
    $region4: #{tpu_custom_call.1} parent=1 // pred_region
      %14 = vsyncadd [#allocation4], 0
      %s16 = sshll.u32 %s0, 4
      %s17 = int_to_ptr.hbm [resolvable:$true] %s16
      %s18 = sshll.u32 [#allocation3], 4
      %s19 = int_to_ptr.vmem [resolvable:$true] %s18
      %21 = dma.hbm_to_vmem [thread:$0]  %s17, 128, %s19, [#allocation4]
    $region5: #{tpu_custom_call.1} parent=1 // pred_fallthru
      _
    // Predicated region
    $region6: #{tpu_custom_call.1} parent=1 // pred_check
      _
    $region7: #{tpu_custom_call.1} parent=1 // pred_check_branch
      %23 = sbr.rel (0) target = $region9
    $region8: #{tpu_custom_call.1} parent=1 // pred_region
      %25 = vsyncadd [#allocation7], 0
      %s27 = sshll.u32 %s1, 4
      %s28 = int_to_ptr.hbm [resolvable:$true] %s27
      %s29 = sshll.u32 [#allocation6], 4
      %s30 = int_to_ptr.vmem [resolvable:$true] %s29
      %32 = dma.hbm_to_vmem [thread:$0]  %s28, 128, %s30, [#allocation7]
    $region9: #{tpu_custom_call.1} parent=1 // pred_fallthru
      _
    // Predicated region
    $region10: #{tpu_custom_call.1} parent=1 // pred_check
      _
    $region11: #{tpu_custom_call.1} parent=1 // pred_check_branch
      %34 = sbr.rel (0) target = $region13
    $region12: #{tpu_custom_call.1} parent=1 // pred_region
      %36 = vsyncadd [#allocation7], 0
      %s38 = sshll.u32 %s2, 4
      %s39 = int_to_ptr.hbm [resolvable:$true] %s38
      %s40 = sshll.u32 [#allocation8], 4
      %s41 = int_to_ptr.vmem [resolvable:$true] %s40
      %43 = dma.hbm_to_vmem [thread:$0]  %s39, 128, %s41, [#allocation7]
    $region13: #{tpu_custom_call.1} parent=1 // pred_fallthru
      _
    // Predicated region
    $region14: #{tpu_custom_call.1} parent=1 // pred_check
      _
    $region15: #{tpu_custom_call.1} parent=1 // pred_check_branch
      %45 = sbr.rel (0) target = $region17
    $region16: #{tpu_custom_call.1} parent=1 // pred_region
      %47 = dma.done [#allocation4], 128
    $region17: #{tpu_custom_call.1} parent=1 // pred_fallthru
      _
    // Predicated region
    $region18: #{tpu_custom_call.1} parent=1 // pred_check
      _
    $region19: #{tpu_custom_call.1} parent=1 // pred_check_branch
      %49 = sbr.rel (0) target = $region21
    $region20: #{tpu_custom_call.1} parent=1 // pred_region
      %51 = dma.done [#allocation7], 128
    $region21: #{tpu_custom_call.1} parent=1 // pred_fallthru
      _
    // Predicated region
    $region22: #{tpu_custom_call.1} parent=1 // pred_check
      _
    $region23: #{tpu_custom_call.1} parent=1 // pred_check_branch
      %53 = sbr.rel (0) target = $region25
    $region24: #{tpu_custom_call.1} parent=1 // pred_region
      %55 = dma.done [#allocation7], 128
    $region25: #{tpu_custom_call.1} parent=1 // pred_fallthru
      _
    %p56 = scmp.eq.s32.totalorder 0, 0
    // Predicated region
    $region26: #{tpu_custom_call.1} parent=1 // pred_check
      %p57 = pneg %p56
    $region27: #{tpu_custom_call.1} parent=1 // pred_check_branch
      %59 = sbr.rel (%p57) target = $region29
    $region28: #{tpu_custom_call.1} parent=1 // pred_region
      %60 = vst [vmem:[#allocation2] sm:$0xff] 0.0
    $region29: #{tpu_custom_call.1} parent=1 // pred_fallthru
      _
    %v61 = vld [vmem:[#allocation3] sm:$0xff]
    %v62 = vld [vmem:[#allocation6] sm:$0xff]
    %v63 = vsub.f32 %v61, %v62
    %v64 = vmul.f32 %v63, %v63
    %v65 = vmul.f32 %v64, 0.00048828125
    %v66 = vld [vmem:[#allocation8] sm:$0xff]
    %v67 = vsub.f32 %v66, %v62
    %v68 = vand.u32 2147483647, %v67
    %v69 = vmul.f32 %v68, 0.00029296876
    %v70 = vadd.f32 %v65, %v69
    %v71 = vand.u32 2147483647, %v63
    %v72 = vmul.f32 %v71, 0.0001953125
    %v73 = vadd.f32 %v70, %v72
    %v74 = vld [vmem:[#allocation2] sm:$0xff]
    %v75 = vadd.f32 %v74, %v73
    %76 = vst [vmem:[#allocation2] sm:$0xff] %v75
    // Predicated region
    $region30: #{tpu_custom_call.1} parent=1 // pred_check
      %p77 = pneg %p56
    $region31: #{tpu_custom_call.1} parent=1 // pred_check_branch
      %79 = sbr.rel (%p77) target = $region33
    $region32: #{tpu_custom_call.1} parent=1 // pred_region
      %v80 = vld [vmem:[#allocation2] sm:$0xff]
      %81 = vadd.xlane.f32.xlu0 %v80
      %v82 = vpop.xlane.xlu0 %81
      %v83 = vrot.slane %v82, 4
      %v84 = vadd.f32 %v82, %v83
      %v85 = vrot.slane %v84, 2
      %v86 = vadd.f32 %v84, %v85
      %v87 = vrot.slane %v86, 1
      %v88 = vadd.f32 %v86, %v87
      %s89 = vtos %v88
      %s90 = scalar_lea.smem [#allocation9], 0
      %91 = sst [smem:[%s90]] %s89
    $region33: #{tpu_custom_call.1} parent=1 // pred_fallthru
      _
    // Predicated region
    $region34: #{tpu_custom_call.1} parent=1 // pred_check
      _
    $region35: #{tpu_custom_call.1} parent=1 // pred_check_branch
      %93 = sbr.rel (0) target = $region37
    $region36: #{tpu_custom_call.1} parent=1 // pred_region
      %95 = vsyncadd [#allocation5], 0
      %s97 = sshll.u32 %s3, 4
      %s98 = int_to_ptr.hbm [resolvable:$true] %s97
      %100 = dma.smem_to_hbm [#allocation9], 16, %s98, [#allocation5]
    $region37: #{tpu_custom_call.1} parent=1 // pred_fallthru
      _
    // Predicated region
    $region38: #{tpu_custom_call.1} parent=1 // pred_check
      _
    $region39: #{tpu_custom_call.1} parent=1 // pred_check_branch
      %102 = sbr.rel (0) target = $region41
    $region40: #{tpu_custom_call.1} parent=1 // pred_region
      %104 = dma.done [#allocation5], 16
    $region41: #{tpu_custom_call.1} parent=1 // pred_fallthru
      _
    %105 = sfence
    %106 = vsyncpa [#allocation4], 1
    %107 = vsyncpa [#allocation7], 1
    %108 = vsyncpa [#allocation5], 1

</llo_original>
